<compile_context>
chip_gen: v7x
topology: tpu7x:2x2x1
jax: 0.10.0
libtpu: 0.0.40
codegen_flags: <defaults>
</compile_context>

<pallas_src>
import functools

import jax
import jax.numpy as jnp
from jax.experimental import pallas as pl
from jax.experimental.pallas import tpu as pltpu


def _ls_ce_kernel(x_ref, t_ref, out_ref, *, n_rows, confidence, smoothing):
    i = pl.program_id(0)

    x = x_ref[...].astype(jnp.float32)        # (TILE_N, C); bf16 input -> f32 compute
    tgt = t_ref[...]                          # (TILE_N, 1) int32 class ids
    tn, c = x.shape

    # Numerically-stable log-softmax pieces; logprobs never materialized.
    m = jnp.max(x, axis=-1, keepdims=True)                                # (TILE_N, 1)
    shifted = x - m
    lse = jnp.log(jnp.sum(jnp.exp(shifted), axis=-1, keepdims=True))      # (TILE_N, 1)

    # Single fused class-axis reduction:
    #   loss_row = conf * (lse - shifted[tgt]) + smoothing * (lse - mean(shifted))
    #            = lse - sum(shifted * (conf * onehot + smoothing / C))
    cls = jax.lax.broadcasted_iota(jnp.int32, (tn, c), 1)
    w = jnp.where(cls == tgt, confidence + smoothing / c, smoothing / c)
    row_dot = jnp.sum(shifted * w, axis=-1, keepdims=True)                # (TILE_N, 1)

    # Mask padded rows of the (possibly ragged) last tile BEFORE reducing.
    # jnp.where keeps possible NaN/inf garbage in padded rows from poisoning the sum.
    row_ids = i * tn + jax.lax.broadcasted_iota(jnp.int32, (tn, 1), 0)
    row_loss = jnp.where(row_ids < n_rows, lse - row_dot, 0.0)            # (TILE_N, 1)

    # Per-tile partial sum, broadcast across the 128 lanes (unmasked vst).
    tile_sum = jnp.sum(row_loss)
    out_ref[...] = jnp.full(out_ref.shape, tile_sum, dtype=out_ref.dtype)


def _pick_tile_n(n, c, itemsize):
    """Largest row tile whose x buffer stays ~<=8 MiB (16 MiB double-buffered)."""
    per_buffer_budget = 8 * 1024 * 1024
    t = per_buffer_budget // max(c * itemsize, 1)
    t = int(max(16, min(t, 1024)))
    t -= t % 16                      # multiple of 16 -> also fine for bf16 (16,128) tiles
    t = max(t, 16)
    if t >= n:
        return n                     # single block == full array (any N allowed)
    return t


def label_smoothing_cross_entropy(x, target, *, smoothing=0.1, tile_n=None,
                                  vmem_limit_bytes=32 * 1024 * 1024):
    """x: (N, C) float, target: (N,) int -> scalar mean label-smoothed CE loss."""
    assert smoothing < 1.0
    n, c = x.shape
    confidence = 1.0 - smoothing

    if tile_n is None:
        tile_n = _pick_tile_n(n, c, x.dtype.itemsize)
    tile_n = max(1, min(tile_n, n))
    num_tiles = pl.cdiv(n, tile_n)

    # Targets stay a thin (TILE_N, 1) int32 VMEM block: after row tiling its
    # footprint is negligible, and it keeps the one-hot compare fully vectorized.
    target2d = target.astype(jnp.int32).reshape(n, 1)

    kernel = functools.partial(_ls_ce_kernel, n_rows=n,
                               confidence=confidence, smoothing=smoothing)

    partials = pl.pallas_call(
        kernel,
        out_shape=jax.ShapeDtypeStruct((num_tiles, 128), jnp.float32),
        grid=(num_tiles,),
        in_specs=[
            pl.BlockSpec((tile_n, c), lambda i: (i, 0)),   # streamed / pipelined
            pl.BlockSpec((tile_n, 1), lambda i: (i, 0)),   # per-tile targets
        ],
        # Lane-dense per-tile partial-sum blocks: tiles are fully independent,
        # so the grid axis can be "parallel" (megacore split on v7x).
        out_specs=pl.BlockSpec((1, 128), lambda i: (i, 0)),
        compiler_params=pltpu.CompilerParams(
            dimension_semantics=("parallel",),
            vmem_limit_bytes=vmem_limit_bytes,
        ),
    )(x, target2d)

    # Tiny (num_tiles,) reduction + mean over the TRUE batch size, done in XLA.
    return jnp.sum(partials[:, 0]) * jnp.float32(1.0 / n)


if __name__ == "__main__":
    def reference(x, target, smoothing=0.1):
        logprobs = jax.nn.log_softmax(x.astype(jnp.float32), axis=-1)
        nll = -jnp.take_along_axis(logprobs, target[:, None], axis=-1)[:, 0]
        smooth = -jnp.mean(logprobs, axis=-1)
        return jnp.mean((1.0 - smoothing) * nll + smoothing * smooth)

    key = jax.random.PRNGKey(0)
    kx, kt = jax.random.split(key)

    # Small test consistent with the module: batch=8 rows, 32 classes (single tile).
    x = jax.random.normal(kx, (8, 32), dtype=jnp.float32)
    t = jax.random.randint(kt, (8,), 0, 32, dtype=jnp.int32)
    loss = label_smoothing_cross_entropy(x, t)
    jax.block_until_ready(loss)
    ref = reference(x, t)
    assert jnp.allclose(loss, ref, atol=1e-5, rtol=1e-5), (loss, ref)

    # Exercise the tiled path with a ragged last tile (grid=3, 8 padded rows masked).
    kx2, kt2 = jax.random.split(kt)
    x2 = jax.random.normal(kx2, (40, 128), dtype=jnp.float32)
    t2 = jax.random.randint(kt2, (40,), 0, 128, dtype=jnp.int32)
    loss2 = label_smoothing_cross_entropy(x2, t2, tile_n=16)
    jax.block_until_ready(loss2)
    ref2 = reference(x2, t2)
    assert jnp.allclose(loss2, ref2, atol=1e-5, rtol=1e-5), (loss2, ref2)

    print("KERNEL_OK")
</pallas_src>

<mosaic_0001>
module attributes {stable_mosaic.version = 11 : i64} {
  func.func @_ls_ce_kernel(%arg0: i32, %arg1: memref<8x32xf32, #tpu.memory_space<vmem>>, %arg2: memref<8x1xi32, #tpu.memory_space<vmem>>, %arg3: memref<1x128xf32, #tpu.memory_space<vmem>>) attributes {dimension_semantics = [#tpu.dimension_semantics<parallel>], iteration_bounds = array<i64: 1>, scalar_prefetch = 0 : i64, scratch_operands = 0 : i64, tpu.core_type = #tpu.core_type<tc>, window_params = [{transform_indices = @transform_0, window_bounds = array<i64: 8, 32>}, {transform_indices = @transform_1, window_bounds = array<i64: 8, 1>}, {transform_indices = @transform_2, window_bounds = array<i64: 1, 128>}]} {
    %c0 = arith.constant 0 : index
    %c0_0 = arith.constant 0 : index
    %0 = vector.load %arg1[%c0, %c0_0] : memref<8x32xf32, #tpu.memory_space<vmem>>, vector<8x32xf32>
    %c0_1 = arith.constant 0 : index
    %c0_2 = arith.constant 0 : index
    %1 = vector.load %arg2[%c0_1, %c0_2] : memref<8x1xi32, #tpu.memory_space<vmem>>, vector<8x1xi32>
    %cst = arith.constant dense<0xFF800000> : vector<8xf32>
    %2 = vector.multi_reduction <maximumf>, %0, %cst [1] : vector<8x32xf32> to vector<8xf32>
    %3 = vector.shape_cast %2 : vector<8xf32> to vector<8x1xf32>
    %4 = vector.broadcast %3 : vector<8x1xf32> to vector<8x32xf32>
    %5 = arith.subf %0, %4 : vector<8x32xf32>
    %6 = math.exp %5 : vector<8x32xf32>
    %cst_3 = arith.constant dense<0.000000e+00> : vector<8xf32>
    %7 = vector.multi_reduction <add>, %6, %cst_3 [1] : vector<8x32xf32> to vector<8xf32>
    %8 = vector.shape_cast %7 : vector<8xf32> to vector<8x1xf32>
    %9 = math.log %8 : vector<8x1xf32>
    %10 = tpu.iota {dimensions = array<i32: 1>} : vector<8x32xi32>
    %11 = vector.broadcast %1 : vector<8x1xi32> to vector<8x32xi32>
    %12 = arith.cmpi eq, %10, %11 : vector<8x32xi32>
    %cst_4 = arith.constant 0.903124988 : f32
    %cst_5 = arith.constant 3.125000e-03 : f32
    %13 = vector.broadcast %cst_4 : f32 to vector<8x32xf32>
    %14 = vector.broadcast %cst_5 : f32 to vector<8x32xf32>
    %15 = arith.select %12, %13, %14 : vector<8x32xi1>, vector<8x32xf32>
    %16 = arith.mulf %5, %15 : vector<8x32xf32>
    %cst_6 = arith.constant dense<0.000000e+00> : vector<8xf32>
    %17 = vector.multi_reduction <add>, %16, %cst_6 [1] : vector<8x32xf32> to vector<8xf32>
    %18 = vector.shape_cast %17 : vector<8xf32> to vector<8x1xf32>
    %c8_i32 = arith.constant 8 : i32
    %19 = arith.muli %arg0, %c8_i32 : i32
    %20 = tpu.iota {dimensions = array<i32: 0>} : vector<8x1xi32>
    %21 = vector.broadcast %19 : i32 to vector<8x1xi32>
    %22 = arith.addi %21, %20 : vector<8x1xi32>
    %c8_i32_7 = arith.constant 8 : i32
    %23 = vector.broadcast %c8_i32_7 : i32 to vector<8x1xi32>
    %24 = arith.cmpi slt, %22, %23 : vector<8x1xi32>
    %25 = arith.subf %9, %18 : vector<8x1xf32>
    %cst_8 = arith.constant 0.000000e+00 : f32
    %26 = vector.broadcast %cst_8 : f32 to vector<8x1xf32>
    %27 = arith.select %24, %25, %26 : vector<8x1xi1>, vector<8x1xf32>
    %28 = vector.shape_cast %27 : vector<8x1xf32> to vector<1x8x1xf32>
    %cst_9 = arith.constant dense<0.000000e+00> : vector<1xf32>
    %29 = vector.multi_reduction <add>, %28, %cst_9 [1, 2] : vector<1x8x1xf32> to vector<1xf32>
    %30 = vector.shape_cast %29 : vector<1xf32> to vector<1x1x1xf32>
    %31 = vector.extract %30[0, 0, 0] : f32 from vector<1x1x1xf32>
    %32 = vector.broadcast %31 : f32 to vector<1x128xf32>
    %c0_10 = arith.constant 0 : index
    %c0_11 = arith.constant 0 : index
    %33 = vector.load %arg3[%c0_10, %c0_11] : memref<1x128xf32, #tpu.memory_space<vmem>>, vector<1x128xf32>
    tpu.vector_store %arg3[%c0_10, %c0_11], %32 {strides = array<i32>} : memref<1x128xf32, #tpu.memory_space<vmem>>, vector<1x128xf32>,
    return
  }
  func.func @transform_0(%arg0: i32) -> (i32, i32) {
    %c0_i32 = arith.constant 0 : i32
    %c0_i32_0 = arith.constant 0 : i32
    return %arg0, %c0_i32 : i32, i32
  }
  func.func @transform_1(%arg0: i32) -> (i32, i32) {
    %c0_i32 = arith.constant 0 : i32
    %c0_i32_0 = arith.constant 0 : i32
    return %arg0, %c0_i32 : i32, i32
  }
  func.func @transform_2(%arg0: i32) -> (i32, i32) {
    %c0_i32 = arith.constant 0 : i32
    %c0_i32_0 = arith.constant 0 : i32
    return %arg0, %c0_i32 : i32, i32
  }
}

</mosaic_0001>

<llo_original>
// kernel: tpu_custom_call.1
$region0: #{tpu_custom_call.1}
  #allocation0 [shape = 'u32[]', space=smem, size = 0x4, offset = 0x4, fixed_abs, tag = 'smem constant byte address 0x4 - core index']
  #allocation1 [shape = 'u32[144,128]{1,0:T(1,128)}', space=vmem, size = 0x12000, scoped, tag = 'internal scratch']
  %s0 = inlined_call_operand.vmem [shape: f32[8,32], index: 0, kind: input, shape index: {}]
  %s1 = inlined_call_operand.vmem [shape: s32[8,1], index: 1, kind: input, shape index: {}]
  %s2 = inlined_call_operand.hbm [shape: f32[1,128], index: 2, kind: output, shape index: {}]
  %s3 = sld [smem:[#allocation0]]
  $region18: #{tpu_custom_call.1} parent=0
    _
  %s5 = ssub.s32 1, %s3
  %s6 = scalar_select 0, %s5, %s3
  $region1: #{tpu_custom_call.1} parent=0
    #allocation2 [shape = 'u8[512]{0}', space=vmem, size = 0x400, scoped, tag = 'output window, operand 0, single buffered']
    #allocation3 [shape = 's32[1]{0}', space=sflag, size = 0x4, scoped, tag = 'scoped memory for tpu_custom_call.1']
    %7 = vsyncpa [#allocation3], 0
    // Predicated region
    $region2: #{tpu_custom_call.1} parent=1 // pred_check
      _
    $region3: #{tpu_custom_call.1} parent=1 // pred_check_branch
      %9 = sbr.rel (0) target = $region5
    $region4: #{tpu_custom_call.1} parent=1 // pred_region
      _
    $region5: #{tpu_custom_call.1} parent=1 // pred_fallthru
      _
    // Predicated region
    $region6: #{tpu_custom_call.1} parent=1 // pred_check
      _
    $region7: #{tpu_custom_call.1} parent=1 // pred_check_branch
      %11 = sbr.rel (0) target = $region9
    $region8: #{tpu_custom_call.1} parent=1 // pred_region
      _
    $region9: #{tpu_custom_call.1} parent=1 // pred_fallthru
      _
    %v12 = vld [vmem:[%s0] sm:$0xff]
    %v13 = vld [vmem:[%s1] sm:$0xff]
    %vm14 = vcmask 261120
    %v15 = vsel %vm14, %v12, -inf
    %16 = vmax.xlane.f32.xlu0 %v15
    %v17 = vpop.xlane.xlu0 %16
    %v18 = vsub.f32 %v12, %v17
    %v19 = vmul.f32 %v18, 1.442695
    %v20 = vpow.pop %v19
    %v21 = vsel %vm14, %v20, 0.0
    %22 = vadd.xlane.f32.xlu0 %v21
    %v23 = vpop.xlane.xlu0 %22
    %v24 = vlog2.pop %v23
    %v25 = vmul.f32 %v24, 0.6931472
    %v26 = vlaneseq
    %v27 = vand.u32 %v26, 127
    %28 = vset.pattern.permute.xlu0 0
    %29 = vperm.xlu0 %28, %v13
    %v30 = vpop.permute.xlu0 %29
    %vm31 = vcmp.eq.s32.totalorder %v27, %v30
    %v32 = vsel %vm31, 0.903125, 0.003125
    %v33 = vmul.f32 %v18, %v32
    %v34 = vsel %vm14, %v33, 0.0
    %35 = vadd.xlane.f32.xlu0 %v34
    %v36 = vpop.xlane.xlu0 %35
    %s37 = smul.u32 0, 8
    %v38 = vlaneseq
    %v39 = vshrl.u32 %v38, 7
    %v40 = vstv %s37
    %v41 = vadd.s32 %v40, %v39
    %vm42 = vcmp.lt.s32.totalorder %v41, 8
    %v43 = vsub.f32 %v25, %v36
    %v44 = vsel %vm42, %v43, 0.0
    %vm45 = vcmask 7168
    %v46 = vsel %vm45, %v44, 0.0
    %47 = vadd.xlane.f32.xlu0 %v46
    %v48 = vpop.xlane.xlu0 %47
    %v49 = vrot.slane %v48, 4
    %v50 = vadd.f32 %v48, %v49
    %v51 = vrot.slane %v50, 2
    %v52 = vadd.f32 %v50, %v51
    %v53 = vrot.slane %v52, 1
    %v54 = vadd.f32 %v52, %v53
    %s55 = vtos %v54
    %v56 = vstv %s55
    %57 = vst [vmem:[#allocation2] sm:$0x1] %v56
    // Predicated region
    $region10: #{tpu_custom_call.1} parent=1 // pred_check
      _
    $region11: #{tpu_custom_call.1} parent=1 // pred_check_branch
      %59 = sbr.rel (0) target = $region13
    $region12: #{tpu_custom_call.1} parent=1 // pred_region
      %s61 = ssub.s32 16, 16
      %62 = vsyncadd [#allocation3], %s61
      %s64 = sshll.u32 [#allocation2], 4
      %s65 = int_to_ptr.vmem [resolvable:$true] %s64
      %67 = dma.vmem_to_hbm [thread:$0]  %s65, 16, %s2, [#allocation3]
    $region13: #{tpu_custom_call.1} parent=1 // pred_fallthru
      _
    // Predicated region
    $region14: #{tpu_custom_call.1} parent=1 // pred_check
      _
    $region15: #{tpu_custom_call.1} parent=1 // pred_check_branch
      %69 = sbr.rel (0) target = $region17
    $region16: #{tpu_custom_call.1} parent=1 // pred_region
      %70 = dma.done [#allocation3], 16
    $region17: #{tpu_custom_call.1} parent=1 // pred_fallthru
      _
    %71 = vsyncpa [#allocation3], 1

</llo_original>
